<compile_context>
chip_gen: v7x
topology: tpu7x:2x2x1
jax: 0.10.0
libtpu: 0.0.40
codegen_flags: <defaults>
</compile_context>

<pallas_src>
import jax
import jax.numpy as jnp
from jax import lax
from jax.experimental import pallas as pl
from jax.experimental.pallas import tpu as pltpu


def _round_up(x, m):
    return ((x + m - 1) // m) * m


_VMEM_LIMIT = 48 * 1024 * 1024   # <= 48 MiB: headroom on v7x (64 MiB/TC)
_TT_MAX = 8                      # time steps per recurrence grid iteration


# ---------------------------------------------------------------------------
# Kernel 1/3: batched matmul + bias  (out = A @ W + b), 2-D parallel grid.
# Used for both the hoisted input projection and the vocab projection.
# ---------------------------------------------------------------------------
def _matmul_bias_kernel(a_ref, w_ref, b_ref, o_ref):
    o_ref[...] = (jnp.dot(a_ref[...], w_ref[...],
                          preferred_element_type=jnp.float32)
                  + b_ref[...]).astype(o_ref.dtype)


def matmul_bias(a, w, b, *, out_dtype=jnp.float32):
    """a: (M, K) bf16, w: (K, N) bf16, b: (1, N) f32.  M%16==0, K%128==0, N%256==0."""
    M, K = a.shape
    N = w.shape[1]
    # N tile: prefer >= 256 so the 256x256 MXUs on v6e/v7x see full tiles.
    tn = N
    for cand in (512, 256, 128):
        if N % cand == 0:
            tn = cand
            break
    # M tile: keep the A tile and the f32 output tile small so the pipeline
    # stays double-buffered and both v7x TCs get plenty of grid cells.
    tm = M
    for cand in (512, 256, 128, 64, 32, 16):
        if M % cand == 0:
            tm = cand
            break
    out_bytes = jnp.dtype(out_dtype).itemsize
    cost = pl.CostEstimate(
        flops=2 * M * K * N,
        transcendentals=0,
        bytes_accessed=(M * K * jnp.dtype(a.dtype).itemsize
                        + K * N * jnp.dtype(w.dtype).itemsize
                        + N * jnp.dtype(b.dtype).itemsize
                        + M * N * out_bytes))
    grid_spec = pltpu.PrefetchScalarGridSpec(
        num_scalar_prefetch=0,
        grid=(M // tm, N // tn),
        in_specs=[
            pl.BlockSpec((tm, K), lambda i, n: (i, 0)),    # A row tile
            pl.BlockSpec((K, tn), lambda i, n: (0, n)),    # W column tile
            pl.BlockSpec((1, tn), lambda i, n: (0, n)),    # bias tile
        ],
        out_specs=pl.BlockSpec((tm, tn), lambda i, n: (i, n)),
    )
    return pl.pallas_call(
        _matmul_bias_kernel,
        out_shape=jax.ShapeDtypeStruct((M, N), out_dtype),
        grid_spec=grid_spec,
        cost_estimate=cost,
        compiler_params=pltpu.CompilerParams(
            dimension_semantics=("parallel", "parallel"),  # shards across TCs
            vmem_limit_bytes=_VMEM_LIMIT),
    )(a, w, b)


# ---------------------------------------------------------------------------
# Kernel 2/3: the sequential LSTM recurrence.  Per grid step it consumes a
# block of Tt precomputed input-gates and emits Tt hidden states (bf16);
# h/c persist in f32 VMEM scratch across the ("arbitrary") time grid.
# ---------------------------------------------------------------------------
def _lstm_recurrence_kernel(gx_ref, whh_ref, h_out_ref, h_scr, c_scr):
    H = h_scr.shape[-1]          # padded hidden size (multiple of 128)
    Tt = gx_ref.shape[0]         # time steps per grid iteration (static)

    @pl.when(pl.program_id(0) == 0)
    def _():
        h_scr[...] = jnp.zeros_like(h_scr)
        c_scr[...] = jnp.zeros_like(c_scr)

    def step(t, carry):
        h_prev = h_scr[...]                      # (B, H) f32
        c_prev = c_scr[...]                      # (B, H) f32
        # gates_x already contains x@W_ih + (b_ih + b_hh); only the serial
        # h-projection remains on the critical path.
        gates = gx_ref[t] + jnp.dot(
            h_prev.astype(whh_ref.dtype), whh_ref[...],
            preferred_element_type=jnp.float32)  # (B, 4H) f32, order i,f,g,o
        i_g = jax.nn.sigmoid(gates[:, 0 * H:1 * H])   # lane-aligned slices
        f_g = jax.nn.sigmoid(gates[:, 1 * H:2 * H])
        g_g = jnp.tanh(gates[:, 2 * H:3 * H])
        o_g = jax.nn.sigmoid(gates[:, 3 * H:4 * H])
        c_new = f_g * c_prev + i_g * g_g
        h_new = o_g * jnp.tanh(c_new)
        c_scr[...] = c_new
        h_scr[...] = h_new
        h_out_ref[t] = h_new.astype(h_out_ref.dtype)   # bf16 writeback
        return carry

    # Partial unroll: keeps LLO scheduling visibility at lower vreg pressure.
    lax.fori_loop(0, Tt, step, 0, unroll=4)


# ---------------------------------------------------------------------------
# Wrapper: embedding gather (plain-JAX glue), padding, and the 3-stage pipe.
# ---------------------------------------------------------------------------
def decoder_lstm_forward(features, captions, params):
    """features: (B, E) f32, captions: (T, B) int32 -> (T+1, B, V) f32."""
    embed_tbl = params["embed"]          # (V, E)
    w_ih = params["w_ih"]                # (E, 4H)
    w_hh = params["w_hh"]                # (H, 4H)
    bias = params["b"]                   # (1, 4H)  (b_ih + b_hh)
    w_out = params["w_out"]              # (H, V)
    b_out = params["b_out"]              # (1, V)

    B, E = features.shape
    T = captions.shape[0]
    H = w_hh.shape[0]
    V = w_out.shape[1]
    Tp1 = T + 1

    # Hardware-friendly padded sizes.  B -> 16 (bf16 sublane packing),
    # E/H -> 128 lanes, V -> 256 so tn >= 256 fills 256x256 MXUs.
    B_pad = _round_up(B, 16)
    E_pad = _round_up(E, 128)
    H_pad = _round_up(H, 128)
    V_pad = _round_up(V, 256)

    # Minimal time padding: Tt = ceil(Tp1 / ceil(Tp1 / _TT_MAX)) so the padded
    # row count (and the dominant vocab matmul) is barely inflated.
    n_blk = -(-Tp1 // _TT_MAX)
    Tt = -(-Tp1 // n_blk)
    Tp1_pad = n_blk * Tt

    # Glue: embedding lookup (dropout == identity / eval) + prepend features,
    # already in bf16 so the padded tensor never round-trips HBM in f32.
    emb = jnp.take(embed_tbl, captions, axis=0).astype(jnp.bfloat16)  # (T,B,E)
    x = jnp.concatenate([features[None].astype(jnp.bfloat16), emb], axis=0)
    x = jnp.pad(x, ((0, Tp1_pad - Tp1), (0, B_pad - B), (0, E_pad - E)))

    # Pad weights per gate so gate boundaries land on 128-lane multiples.
    def pad_gate_cols(w2d, rows_pad):
        k = w2d.shape[0]
        w4 = w2d.reshape(k, 4, H)
        w4 = jnp.pad(w4, ((0, rows_pad - k), (0, 0), (0, H_pad - H)))
        return w4.reshape(rows_pad, 4 * H_pad)

    w_ih_p = pad_gate_cols(w_ih, E_pad).astype(jnp.bfloat16)
    w_hh_p = pad_gate_cols(w_hh, H_pad).astype(jnp.bfloat16)
    bias_p = pad_gate_cols(bias, 1).astype(jnp.float32)
    w_out_p = jnp.pad(w_out, ((0, H_pad - H), (0, V_pad - V))).astype(jnp.bfloat16)
    b_out_p = jnp.pad(b_out, ((0, 0), (0, V_pad - V))).astype(jnp.float32)

    M = Tp1_pad * B_pad   # batched rows for the two big matmuls

    # ---- 1) hoisted input projection: one big parallel matmul --------------
    gx = matmul_bias(x.reshape(M, E_pad), w_ih_p, bias_p)        # f32
    gx = gx.reshape(Tp1_pad, B_pad, 4 * H_pad)

    # ---- 2) sequential recurrence (time-blocked) ----------------------------
    grid_spec = pltpu.PrefetchScalarGridSpec(
        num_scalar_prefetch=0,
        grid=(Tp1_pad // Tt,),
        in_specs=[
            pl.BlockSpec((Tt, B_pad, 4 * H_pad), lambda i: (i, 0, 0)),  # gates_x
            pl.BlockSpec((H_pad, 4 * H_pad), lambda i: (0, 0)),         # W_hh
        ],
        out_specs=pl.BlockSpec((Tt, B_pad, H_pad), lambda i: (i, 0, 0)),
        scratch_shapes=[
            pltpu.VMEM((B_pad, H_pad), jnp.float32),   # h state
            pltpu.VMEM((B_pad, H_pad), jnp.float32),   # c state
        ],
    )
    h_all = pl.pallas_call(
        _lstm_recurrence_kernel,
        out_shape=jax.ShapeDtypeStruct((Tp1_pad, B_pad, H_pad), jnp.bfloat16),
        grid_spec=grid_spec,
        compiler_params=pltpu.CompilerParams(
            dimension_semantics=("arbitrary",),        # inherently sequential
            vmem_limit_bytes=_VMEM_LIMIT),
    )(gx, w_hh_p)

    # ---- 3) vocab projection: one big parallel matmul over all steps -------
    logits = matmul_bias(h_all.reshape(M, H_pad), w_out_p, b_out_p)
    logits = logits.reshape(Tp1_pad, B_pad, V_pad)
    return logits[:Tp1, :B, :V]


# ---------------------------------------------------------------------------
# Pure-JAX reference (same math, same gate order) for correctness check.
# ---------------------------------------------------------------------------
def decoder_lstm_reference(features, captions, params):
    bf = lambda a: a.astype(jnp.bfloat16).astype(jnp.float32)
    embed_tbl = params["embed"]
    w_ih, w_hh = bf(params["w_ih"]), bf(params["w_hh"])
    w_out = bf(params["w_out"])
    bias, b_out = params["b"], params["b_out"]
    H = params["w_hh"].shape[0]

    emb = jnp.take(embed_tbl, captions, axis=0)
    x = bf(jnp.concatenate([features[None], emb], axis=0))   # (Tp1, B, E)
    Bsz = x.shape[1]
    hi = lax.Precision.HIGHEST

    def step(carry, x_t):
        h, c = carry
        gates = (jnp.dot(x_t, w_ih, precision=hi)
                 + jnp.dot(h, w_hh, precision=hi) + bias)
        i = jax.nn.sigmoid(gates[:, 0 * H:1 * H])
        f = jax.nn.sigmoid(gates[:, 1 * H:2 * H])
        g = jnp.tanh(gates[:, 2 * H:3 * H])
        o = jax.nn.sigmoid(gates[:, 3 * H:4 * H])
        c = f * c + i * g
        h = o * jnp.tanh(c)
        return (h, c), h

    h0 = jnp.zeros((Bsz, H), jnp.float32)
    _, hs = lax.scan(step, (h0, h0), x)
    return jnp.dot(hs, w_out, precision=hi) + b_out


def init_params(key, embed_size, hidden_size, vocab_size):
    ks = jax.random.split(key, 7)
    scale = 0.1
    return {
        "embed": scale * jax.random.normal(ks[0], (vocab_size, embed_size),
                                           jnp.float32),
        "w_ih": scale * jax.random.normal(ks[1], (embed_size, 4 * hidden_size),
                                          jnp.float32),
        "w_hh": scale * jax.random.normal(ks[2], (hidden_size, 4 * hidden_size),
                                          jnp.float32),
        # combined b_ih + b_hh
        "b": scale * jax.random.normal(ks[3], (1, 4 * hidden_size),
                                       jnp.float32),
        "w_out": scale * jax.random.normal(ks[4], (hidden_size, vocab_size),
                                           jnp.float32),
        "b_out": scale * jax.random.normal(ks[5], (1, vocab_size), jnp.float32),
    }


if __name__ == "__main__":
    key = jax.random.PRNGKey(0)
    embed_size, hidden_size, vocab_size = 32, 32, 64
    B, T = 2, 8

    kp, kf, kc = jax.random.split(key, 3)
    params = init_params(kp, embed_size, hidden_size, vocab_size)
    features = jax.random.normal(kf, (B, embed_size), jnp.float32)
    captions = jax.random.randint(kc, (T, B), 0, vocab_size, jnp.int32)

    out = decoder_lstm_forward(features, captions, params)
    out = jax.block_until_ready(out)
    assert out.shape == (T + 1, B, vocab_size), out.shape
    assert jnp.all(jnp.isfinite(out))

    ref = jax.block_until_ready(decoder_lstm_reference(features, captions, params))
    assert jnp.allclose(out, ref, atol=3e-2, rtol=3e-2), float(
        jnp.max(jnp.abs(out - ref)))
    print("KERNEL_OK")
</pallas_src>

<mosaic_0001>
module attributes {stable_mosaic.version = 11 : i64} {
  func.func @_matmul_bias_kernel(%arg0: i32, %arg1: i32, %arg2: memref<32x128xbf16, #tpu.memory_space<vmem>>, %arg3: memref<128x512xbf16, #tpu.memory_space<vmem>>, %arg4: memref<1x512xf32, #tpu.memory_space<vmem>>, %arg5: memref<32x512xf32, #tpu.memory_space<vmem>>) attributes {dimension_semantics = [#tpu.dimension_semantics<parallel>, #tpu.dimension_semantics<parallel>], iteration_bounds = array<i64: 5, 1>, scalar_prefetch = 0 : i64, scratch_operands = 0 : i64, tpu.core_type = #tpu.core_type<tc>, window_params = [{transform_indices = @transform_0, window_bounds = array<i64: 32, 128>}, {transform_indices = @transform_1, window_bounds = array<i64: 128, 512>}, {transform_indices = @transform_2, window_bounds = array<i64: 1, 512>}, {transform_indices = @transform_3, window_bounds = array<i64: 32, 512>}]} {
    %c0 = arith.constant 0 : index
    %c0_0 = arith.constant 0 : index
    %0 = vector.load %arg2[%c0, %c0_0] : memref<32x128xbf16, #tpu.memory_space<vmem>>, vector<32x128xbf16>
    %c0_1 = arith.constant 0 : index
    %c0_2 = arith.constant 0 : index
    %1 = vector.load %arg3[%c0_1, %c0_2] : memref<128x512xbf16, #tpu.memory_space<vmem>>, vector<128x512xbf16>
    %cst = arith.constant dense<0.000000e+00> : vector<32x512xf32>
    %2 = tpu.matmul %0, %1, %cst {dimension_numbers = #tpu.dot_dimension_numbers<[1], [0], [0], [1], [0, 0, 1, 1], [], []>} : vector<32x128xbf16>, vector<128x512xbf16>, vector<32x512xf32> -> vector<32x512xf32>
    %c0_3 = arith.constant 0 : index
    %c0_4 = arith.constant 0 : index
    %3 = vector.load %arg4[%c0_3, %c0_4] : memref<1x512xf32, #tpu.memory_space<vmem>>, vector<1x512xf32>
    %4 = vector.broadcast %3 : vector<1x512xf32> to vector<32x512xf32>
    %5 = arith.addf %2, %4 : vector<32x512xf32>
    %c0_5 = arith.constant 0 : index
    %c0_6 = arith.constant 0 : index
    %6 = vector.load %arg5[%c0_5, %c0_6] : memref<32x512xf32, #tpu.memory_space<vmem>>, vector<32x512xf32>
    tpu.vector_store %arg5[%c0_5, %c0_6], %5 {strides = array<i32>} : memref<32x512xf32, #tpu.memory_space<vmem>>, vector<32x512xf32>,
    return
  }
  func.func @transform_0(%arg0: i32, %arg1: i32) -> (i32, i32) {
    %c0_i32 = arith.constant 0 : i32
    %c0_i32_0 = arith.constant 0 : i32
    return %arg0, %c0_i32 : i32, i32
  }
  func.func @transform_1(%arg0: i32, %arg1: i32) -> (i32, i32) {
    %c0_i32 = arith.constant 0 : i32
    %c0_i32_0 = arith.constant 0 : i32
    return %c0_i32, %arg1 : i32, i32
  }
  func.func @transform_2(%arg0: i32, %arg1: i32) -> (i32, i32) {
    %c0_i32 = arith.constant 0 : i32
    %c0_i32_0 = arith.constant 0 : i32
    return %c0_i32, %arg1 : i32, i32
  }
  func.func @transform_3(%arg0: i32, %arg1: i32) -> (i32, i32) {
    %c0_i32 = arith.constant 0 : i32
    return %arg0, %arg1 : i32, i32
  }
}

</mosaic_0001>

<llo_original>
// kernel: tpu_custom_call.1
$region0: #{tpu_custom_call.1}
  #allocation0 [shape = 'u32[]', space=smem, size = 0x4, offset = 0x4, fixed_abs, tag = 'smem constant byte address 0x4 - core index']
  #allocation1 [shape = 'u32[144,128]{1,0:T(1,128)}', space=vmem, size = 0x12000, scoped, tag = 'internal scratch']
  %s0 = inlined_call_operand.hbm [shape: bf16[160,128], index: 0, kind: input, shape index: {}]
  %s1 = inlined_call_operand.hbm [shape: bf16[128,512], index: 1, kind: input, shape index: {}]
  %s2 = inlined_call_operand.vmem [shape: f32[1,512], index: 2, kind: input, shape index: {}]
  %s3 = inlined_call_operand.hbm [shape: f32[160,512], index: 3, kind: output, shape index: {}]
  %s4 = sld [smem:[#allocation0]]
  $region53: #{tpu_custom_call.1} parent=0
    _
  %s6 = ssub.s32 1, %s4
  %s7 = scalar_select 0, %s6, %s4
  $region1: #{tpu_custom_call.1} parent=0
    #allocation2 [shape = 'u8[16384]{0}', space=vmem, size = 0x4000, scoped, tag = 'input window, operand 0']
    #allocation3 [shape = 's32[2]{0}', space=sflag, size = 0x8, scoped, tag = 'scoped memory for tpu_custom_call.1']
    #allocation4 [shape = 's32[2]{0}', space=sflag, size = 0x8, scoped, tag = 'scoped memory for tpu_custom_call.1']
    #allocation5 [shape = 'u8[131072]{0}', space=vmem, size = 0x20000, scoped, tag = 'input window, operand 1, single buffered']
    #allocation6 [shape = 's32[1]{0}', space=sflag, size = 0x4, scoped, tag = 'scoped memory for tpu_custom_call.1']
    #allocation7 [shape = 'u8[131072]{0}', space=vmem, size = 0x20000, scoped, tag = 'output window, operand 0']
    %8 = vsyncpa [#allocation3], 0
    %s9 = scalar_lea.sflag [#allocation3], 1
    %10 = vsyncpa %s9, 0
    %11 = vsyncpa [#allocation6], 0
    %12 = vsyncpa [#allocation4], 0
    %s13 = scalar_lea.sflag [#allocation4], 1
    %14 = vsyncpa %s13, 0
    loop: start=0, step=1, limit=7
    $region2: #{tpu_custom_call.1} parent=1 // loop_pre_header
      _
    $region3: #{tpu_custom_call.1} parent=1 // loop_header
      %s16 = sphi 0, %s20
      %p17 = scmp.ge.s32.totalorder %s16, 7
      %s23 = sphi 0, %s35
      %s24 = sphi 0, %s31
      %s25 = sphi 0, %s23
      %s26 = sphi 0, %s24
      %s27 = sphi 0, %s25
      %s28 = sphi 0, %s26
      %s38 = sphi 0, %s40
      %s41 = sphi 0, %s38
      %s42 = sphi 0, %s41
      %s58 = sphi 0, %s42
      %s64 = sphi 0, %s66
      %s67 = sphi 0, %s64
      %s68 = sphi 0, %s67
      %s84 = sphi 0, %s68
      %s90 = sphi 0, %s92
      %s93 = sphi 0, %s90
      %s94 = sphi 0, %s93
      %s110 = sphi 0, %s94
      %s118 = sphi 0, %s120
      %s121 = sphi 0, %s118
      %s122 = sphi 0, %s121
      %s138 = sphi 0, %s122
    $region4: #{tpu_custom_call.1} parent=1 // loop_header_branch
      %19 = sbr.rel (%p17) target = $region8
    $region5: #{tpu_custom_call.1} parent=1 // loop_body
      %s21 = ssub.s32 %s16, 1
      %s22 = ssub.s32 %s16, 2
      %s29 = sadd.s32 1, %s24
      %p30 = scmp.ge.s32.totalorder %s29, 1
      %s31 = scalar_select %p30, 0, %s29
      %s32 = sadd.s32 1, %s23
      %s33 = scalar_select %p30, %s32, %s23
      %p34 = scmp.ge.s32.totalorder %s33, 5
      %s35 = scalar_select %p34, 0, %s33
      %s36 = ssub.s32 %s23, %s35
      %p37 = scmp.eq.s32.totalorder %s36, 0
      %s39 = sadd.s32 %s38, 1
      %s40 = scalar_select %p37, %s38, %s39
      %p43 = pneg %p37
      %p44 = scmp.eq.s32.totalorder %s16, 4
      %p45 = por %p43, %p44
      %p46 = scmp.ne.s32.totalorder %s38, %s41
      %p47 = scmp.eq.s32.totalorder %s16, 0
      %p48 = por %p46, %p47
      %p49 = scmp.ne.s32.totalorder %s38, %s41
      %p50 = scmp.eq.s32.totalorder %s21, 4
      %p51 = por %p49, %p50
      %p52 = scmp.ne.s32.totalorder %s41, %s42
      %p53 = scmp.eq.s32.totalorder %s21, 0
      %p54 = por %p52, %p53
      %p55 = scmp.ne.s32.totalorder %s41, %s42
      %p56 = scmp.eq.s32.totalorder %s22, 4
      %p57 = por %p55, %p56
      %p59 = scmp.ne.s32.totalorder %s42, %s58
      %p60 = scmp.eq.s32.totalorder %s22, 0
      %p61 = por %p59, %p60
      %s62 = ssub.s32 %s24, %s31
      %p63 = scmp.eq.s32.totalorder %s62, 0
      %s65 = sadd.s32 %s64, 1
      %s66 = scalar_select %p63, %s64, %s65
      %p69 = pneg %p63
      %p70 = scmp.eq.s32.totalorder %s16, 4
      %p71 = por %p69, %p70
      %p72 = scmp.ne.s32.totalorder %s64, %s67
      %p73 = scmp.eq.s32.totalorder %s16, 0
      %p74 = por %p72, %p73
      %p75 = scmp.ne.s32.totalorder %s64, %s67
      %p76 = scmp.eq.s32.totalorder %s21, 4
      %p77 = por %p75, %p76
      %p78 = scmp.ne.s32.totalorder %s67, %s68
      %p79 = scmp.eq.s32.totalorder %s21, 0
      %p80 = por %p78, %p79
      %p81 = scmp.ne.s32.totalorder %s67, %s68
      %p82 = scmp.eq.s32.totalorder %s22, 4
      %p83 = por %p81, %p82
      %p85 = scmp.ne.s32.totalorder %s68, %s84
      %p86 = scmp.eq.s32.totalorder %s22, 0
      %p87 = por %p85, %p86
      %s88 = ssub.s32 %s24, %s31
      %p89 = scmp.eq.s32.totalorder %s88, 0
      %s91 = sadd.s32 %s90, 1
      %s92 = scalar_select %p89, %s90, %s91
      %p95 = pneg %p89
      %p96 = scmp.eq.s32.totalorder %s16, 4
      %p97 = por %p95, %p96
      %p98 = scmp.ne.s32.totalorder %s90, %s93
      %p99 = scmp.eq.s32.totalorder %s16, 0
      %p100 = por %p98, %p99
      %p101 = scmp.ne.s32.totalorder %s90, %s93
      %p102 = scmp.eq.s32.totalorder %s21, 4
      %p103 = por %p101, %p102
      %p104 = scmp.ne.s32.totalorder %s93, %s94
      %p105 = scmp.eq.s32.totalorder %s21, 0
      %p106 = por %p104, %p105
      %p107 = scmp.ne.s32.totalorder %s93, %s94
      %p108 = scmp.eq.s32.totalorder %s22, 4
      %p109 = por %p107, %p108
      %p111 = scmp.ne.s32.totalorder %s94, %s110
      %p112 = scmp.eq.s32.totalorder %s22, 0
      %p113 = por %p111, %p112
      %s114 = ssub.s32 %s23, %s35
      %s115 = ssub.s32 %s24, %s31
      %s116 = sor.u32 %s114, %s115
      %p117 = scmp.eq.s32.totalorder %s116, 0
      %s119 = sadd.s32 %s118, 1
      %s120 = scalar_select %p117, %s118, %s119
      %p123 = pneg %p117
      %p124 = scmp.eq.s32.totalorder %s16, 4
      %p125 = por %p123, %p124
      %p126 = scmp.ne.s32.totalorder %s118, %s121
      %p127 = scmp.eq.s32.totalorder %s16, 0
      %p128 = por %p126, %p127
      %p129 = scmp.ne.s32.totalorder %s118, %s121
      %p130 = scmp.eq.s32.totalorder %s21, 4
      %p131 = por %p129, %p130
      %p132 = scmp.ne.s32.totalorder %s121, %s122
      %p133 = scmp.eq.s32.totalorder %s21, 0
      %p134 = por %p132, %p133
      %p135 = scmp.ne.s32.totalorder %s121, %s122
      %p136 = scmp.eq.s32.totalorder %s22, 4
      %p137 = por %p135, %p136
      %p139 = scmp.ne.s32.totalorder %s122, %s138
      %p140 = scmp.eq.s32.totalorder %s22, 0
      %p141 = por %p139, %p140
      %p142 = scmp.le.s32.totalorder 1, %s16
      %p143 = scmp.lt.s32.totalorder %s16, 6
      %p144 = pnand %p142, %p143
      %p145 = pneg %p144
      // Predicated region
      $region9: #{tpu_custom_call.1} parent=5 // pred_check
        _
      $region10: #{tpu_custom_call.1} parent=5 // pred_check_branch
        %147 = sbr.rel (%p144) target = $region12
      $region11: #{tpu_custom_call.1} parent=5 // pred_region
        %s148 = ssub.s32 %s16, 1
        // Predicated region
        $region13: #{tpu_custom_call.1} parent=11 // pred_check
          %p149 = pneg %p80
        $region14: #{tpu_custom_call.1} parent=11 // pred_check_branch
          %151 = sbr.rel (%p149) target = $region16
        $region15: #{tpu_custom_call.1} parent=11 // pred_region
          %s152 = smul.u32 4, %s26
          %s154 = ssub.s32 4096, 4096
          %155 = vsyncadd [#allocation6], %s154
          %s156 = smul.addr %s152, 64
          %s157 = scalar_lea.hbm %s1, %s156
          %s158 = sshll.u32 [#allocation5], 4
          %s159 = int_to_ptr.vmem [resolvable:$true] %s158
          %164 = dma.hbm_to_vmem [thread:$0]  %s157, 4096, %s159, [#allocation6], 256, 256, 16
        $region16: #{tpu_custom_call.1} parent=11 // pred_fallthru
          _
        // Predicated region
        $region17: #{tpu_custom_call.1} parent=11 // pred_check
          %p165 = pneg %p106
        $region18: #{tpu_custom_call.1} parent=11 // pred_check_branch
          %167 = sbr.rel (%p165) target = $region20
        $region19: #{tpu_custom_call.1} parent=11 // pred_region
          %s168 = smul.u32 4, %s26
          %p169 = scmp.lt.s32.totalorder %s168, 3
          %s170 = scalar_select %p169, %s168, 3
          %s171 = scalar_lea.vmem %s2, %s170
          %s172 = smul.u32 4, %s26
        $region20: #{tpu_custom_call.1} parent=11 // pred_fallthru
          _
      $region12: #{tpu_custom_call.1} parent=5 // pred_fallthru
        _
      %p173 = scmp.lt.s32.totalorder %s16, 5
      // Predicated region
      $region21: #{tpu_custom_call.1} parent=5 // pred_check
        %p174 = pneg %p173
      $region22: #{tpu_custom_call.1} parent=5 // pred_check_branch
        %176 = sbr.rel (%p174) target = $region24
      $region23: #{tpu_custom_call.1} parent=5 // pred_region
        // Predicated region
        $region25: #{tpu_custom_call.1} parent=23 // pred_check
          %p177 = pneg %p48
        $region26: #{tpu_custom_call.1} parent=23 // pred_check_branch
          %179 = sbr.rel (%p177) target = $region28
        $region27: #{tpu_custom_call.1} parent=23 // pred_region
          %s180 = sand.u32 %s38, 1
          %s181 = scalar_lea.sflag [#allocation3], %s180
          %s182 = sand.u32 %s38, 1
          %s183 = smul.addr %s182, 16
          %s184 = scalar_lea.vmem [#allocation2], %s183
          %s185 = smul.u32 4, %s23
          %s187 = ssub.s32 256, 256
          %188 = vsyncadd %s181, %s187
          %s189 = smul.addr %s185, 64
          %s190 = scalar_lea.hbm %s0, %s189
          %s191 = sshll.u32 %s184, 4
          %s192 = int_to_ptr.vmem [resolvable:$true] %s191
          %197 = dma.hbm_to_vmem [thread:$0]  %s190, 256, %s192, %s181, 64, 64, 4
        $region28: #{tpu_custom_call.1} parent=23 // pred_fallthru
          _
      $region24: #{tpu_custom_call.1} parent=5 // pred_fallthru
        _
      %p198 = scmp.le.s32.totalorder 1, %s16
      %p199 = scmp.lt.s32.totalorder %s16, 6
      %p200 = pnand %p198, %p199
      %p201 = pneg %p200
      // Predicated region
      $region29: #{tpu_custom_call.1} parent=5 // pred_check
        _
      $region30: #{tpu_custom_call.1} parent=5 // pred_check_branch
        %203 = sbr.rel (%p200) target = $region32
      $region31: #{tpu_custom_call.1} parent=5 // pred_region
        %s204 = ssub.s32 %s16, 1
        %s205 = sand.u32 %s41, 1
        %s206 = scalar_lea.sflag [#allocation3], %s205
        %s207 = sand.u32 %s41, 1
        %s208 = smul.addr %s207, 16
        %s209 = scalar_lea.vmem [#allocation2], %s208
        // Predicated region
        $region33: #{tpu_custom_call.1} parent=31 // pred_check
          %p210 = pneg %p54
        $region34: #{tpu_custom_call.1} parent=31 // pred_check_branch
          %212 = sbr.rel (%p210) target = $region36
        $region35: #{tpu_custom_call.1} parent=31 // pred_region
          %213 = dma.done %s206, 256
        $region36: #{tpu_custom_call.1} parent=31 // pred_fallthru
          _
        // Predicated region
        $region37: #{tpu_custom_call.1} parent=31 // pred_check
          %p214 = pneg %p80
        $region38: #{tpu_custom_call.1} parent=31 // pred_check_branch
          %216 = sbr.rel (%p214) target = $region40
        $region39: #{tpu_custom_call.1} parent=31 // pred_region
          %217 = dma.done [#allocation6], 4096
        $region40: #{tpu_custom_call.1} parent=31 // pred_fallthru
          _
        %s218 = sand.u32 %s41, 1
        %s219 = scalar_lea.sflag [#allocation3], %s218
        %s220 = sand.u32 %s41, 1
        %s221 = smul.addr %s220, 16
        %s222 = scalar_lea.vmem [#allocation2], %s221
        %p223 = pneg %p54
        %p224 = pneg %p51
        %p225 = pneg %p80
        %p226 = pneg %p77
        %s227 = smul.u32 4, %s26
        %p228 = scmp.lt.s32.totalorder %s227, 3
        %s229 = scalar_select %p228, %s227, 3
        %s230 = scalar_lea.vmem %s2, %s229
        %p231 = pneg %p106
        %p232 = pneg %p103
        %p233 = pneg %p134
        %p234 = pneg %p131
        %s235 = sand.u32 %s121, 1
        %s236 = scalar_lea.sflag [#allocation4], %s235
        %s237 = sand.u32 %s121, 1
        %s238 = smul.addr %s237, 128
        %s239 = scalar_lea.vmem [#allocation7], %s238
        %s240 = smul.u32 4, %s25
        %s241 = smul.u32 4, %s26
        %s242 = smul.u32 4, %s26
        %p243 = scmp.lt.s32.totalorder %s242, 3
        %s244 = scalar_select %p243, %s242, 3
        %s245 = scalar_lea.vmem %s2, %s244
        %s246 = smul.u32 4, %s26
        %s247 = smul.u32 4, %s25
        %s248 = smul.u32 4, %s26
        %v250 = vld [vmem:[%s209] sm:$0xf]
        %v251 = vld [vmem:[%s209 + $0x4] sm:$0xf]
        %v252 = vld [vmem:[%s209 + $0x8] sm:$0xf]
        %v253 = vld [vmem:[%s209 + $0xc] sm:$0xf]
        %v254 = vld [vmem:[#allocation5] sm:$0xff]
        %v255 = vld [vmem:[#allocation5 + $0x8] sm:$0xff]
        %v256 = vld [vmem:[#allocation5 + $0x10] sm:$0xff]
        %v257 = vld [vmem:[#allocation5 + $0x18] sm:$0xff]
        %v258 = vld [vmem:[#allocation5 + $0x20] sm:$0xff]
        %v259 = vld [vmem:[#allocation5 + $0x28] sm:$0xff]
        %v260 = vld [vmem:[#allocation5 + $0x30] sm:$0xff]
        %v261 = vld [vmem:[#allocation5 + $0x38] sm:$0xff]
        %v262 = vld [vmem:[#allocation5 + $0x40] sm:$0xff]
        %v263 = vld [vmem:[#allocation5 + $0x48] sm:$0xff]
        %v264 = vld [vmem:[#allocation5 + $0x50] sm:$0xff]
        %v265 = vld [vmem:[#allocation5 + $0x58] sm:$0xff]
        %v266 = vld [vmem:[#allocation5 + $0x60] sm:$0xff]
        %v267 = vld [vmem:[#allocation5 + $0x68] sm:$0xff]
        %v268 = vld [vmem:[#allocation5 + $0x70] sm:$0xff]
        %v269 = vld [vmem:[#allocation5 + $0x78] sm:$0xff]
        %v270 = vld [vmem:[#allocation5 + $0x80] sm:$0xff]
        %v271 = vld [vmem:[#allocation5 + $0x88] sm:$0xff]
        %v272 = vld [vmem:[#allocation5 + $0x90] sm:$0xff]
        %v273 = vld [vmem:[#allocation5 + $0x98] sm:$0xff]
        %v274 = vld [vmem:[#allocation5 + $0xa0] sm:$0xff]
        %v275 = vld [vmem:[#allocation5 + $0xa8] sm:$0xff]
        %v276 = vld [vmem:[#allocation5 + $0xb0] sm:$0xff]
        %v277 = vld [vmem:[#allocation5 + $0xb8] sm:$0xff]
        %v278 = vld [vmem:[#allocation5 + $0xc0] sm:$0xff]
        %v279 = vld [vmem:[#allocation5 + $0xc8] sm:$0xff]
        %v280 = vld [vmem:[#allocation5 + $0xd0] sm:$0xff]
        %v281 = vld [vmem:[#allocation5 + $0xd8] sm:$0xff]
        %v282 = vld [vmem:[#allocation5 + $0xe0] sm:$0xff]
        %v283 = vld [vmem:[#allocation5 + $0xe8] sm:$0xff]
        %v284 = vld [vmem:[#allocation5 + $0xf0] sm:$0xff]
        %v285 = vld [vmem:[#allocation5 + $0xf8] sm:$0xff]
        %v286 = vld [vmem:[%s245] sm:$0xf]
        %v288 = vlaneseq
        %v289 = vshrl.u32 %v288, 7
        %v290 = vsub.s32 0, %v289
        %v291 = vrot.slane %v286, %v290
        %v292 = vlaneseq
        %v293 = vshrl.u32 %v292, 7
        %v294 = vsub.s32 1, %v293
        %v295 = vrot.slane %v286, %v294
        %v296 = vlaneseq
        %v297 = vshrl.u32 %v296, 7
        %v298 = vsub.s32 2, %v297
        %v299 = vrot.slane %v286, %v298
        %v300 = vlaneseq
        %v301 = vshrl.u32 %v300, 7
        %v302 = vsub.s32 3, %v301
        %v303 = vrot.slane %v286, %v302
        %v312 = vunpack.c.l.b16 %v250
        %v313 = vunpack.c.l.b16 %v251
        %v314 = vunpack.c.l.b16 %v252
        %v315 = vunpack.c.l.b16 %v253
        %v316 = vpack.c.b16 %v313, %v312
        %v317 = vpack.c.b16 %v315, %v314
        %v352 = vunpack.c.l.b16 %v254
        %v353 = vunpack.c.h.b16 %v254
        %v354 = vunpack.c.l.b16 %v255
        %v355 = vunpack.c.h.b16 %v255
        %v356 = vunpack.c.l.b16 %v256
        %v357 = vunpack.c.h.b16 %v256
        %v358 = vunpack.c.l.b16 %v257
        %v359 = vunpack.c.h.b16 %v257
        %v360 = vunpack.c.l.b16 %v258
        %v361 = vunpack.c.h.b16 %v258
        %v362 = vunpack.c.l.b16 %v259
        %v363 = vunpack.c.h.b16 %v259
        %v364 = vunpack.c.l.b16 %v260
        %v365 = vunpack.c.h.b16 %v260
        %v366 = vunpack.c.l.b16 %v261
        %v367 = vunpack.c.h.b16 %v261
        %v368 = vunpack.c.l.b16 %v262
        %v369 = vunpack.c.h.b16 %v262
        %v370 = vunpack.c.l.b16 %v263
        %v371 = vunpack.c.h.b16 %v263
        %v372 = vunpack.c.l.b16 %v264
        %v373 = vunpack.c.h.b16 %v264
        %v374 = vunpack.c.l.b16 %v265
        %v375 = vunpack.c.h.b16 %v265
        %v376 = vunpack.c.l.b16 %v266
        %v377 = vunpack.c.h.b16 %v266
        %v378 = vunpack.c.l.b16 %v267
        %v379 = vunpack.c.h.b16 %v267
        %v380 = vunpack.c.l.b16 %v268
        %v381 = vunpack.c.h.b16 %v268
        %v382 = vunpack.c.l.b16 %v269
        %v383 = vunpack.c.h.b16 %v269
        %v384 = vunpack.c.l.b16 %v270
        %v385 = vunpack.c.h.b16 %v270
        %v386 = vunpack.c.l.b16 %v271
        %v387 = vunpack.c.h.b16 %v271
        %v388 = vunpack.c.l.b16 %v272
        %v389 = vunpack.c.h.b16 %v272
        %v390 = vunpack.c.l.b16 %v273
        %v391 = vunpack.c.h.b16 %v273
        %v392 = vunpack.c.l.b16 %v274
        %v393 = vunpack.c.h.b16 %v274
        %v394 = vunpack.c.l.b16 %v275
        %v395 = vunpack.c.h.b16 %v275
        %v396 = vunpack.c.l.b16 %v276
        %v397 = vunpack.c.h.b16 %v276
        %v398 = vunpack.c.l.b16 %v277
        %v399 = vunpack.c.h.b16 %v277
        %v400 = vunpack.c.l.b16 %v278
        %v401 = vunpack.c.h.b16 %v278
        %v402 = vunpack.c.l.b16 %v279
        %v403 = vunpack.c.h.b16 %v279
        %v404 = vunpack.c.l.b16 %v280
        %v405 = vunpack.c.h.b16 %v280
        %v406 = vunpack.c.l.b16 %v281
        %v407 = vunpack.c.h.b16 %v281
        %v408 = vunpack.c.l.b16 %v282
        %v409 = vunpack.c.h.b16 %v282
        %v410 = vunpack.c.l.b16 %v283
        %v411 = vunpack.c.h.b16 %v283
        %v412 = vunpack.c.l.b16 %v284
        %v413 = vunpack.c.h.b16 %v284
        %v414 = vunpack.c.l.b16 %v285
        %v415 = vunpack.c.h.b16 %v285
        %v416 = vpack.c.b16 %v356, %v352
        %v417 = vpack.c.b16 %v357, %v353
        %v418 = vpack.c.b16 %v358, %v354
        %v419 = vpack.c.b16 %v359, %v355
        %v420 = vpack.c.b16 %v364, %v360
        %v421 = vpack.c.b16 %v365, %v361
        %v422 = vpack.c.b16 %v366, %v362
        %v423 = vpack.c.b16 %v367, %v363
        %v424 = vpack.c.b16 %v372, %v368
        %v425 = vpack.c.b16 %v373, %v369
        %v426 = vpack.c.b16 %v374, %v370
        %v427 = vpack.c.b16 %v375, %v371
        %v428 = vpack.c.b16 %v380, %v376
        %v429 = vpack.c.b16 %v381, %v377
        %v430 = vpack.c.b16 %v382, %v378
        %v431 = vpack.c.b16 %v383, %v379
        %v432 = vpack.c.b16 %v388, %v384
        %v433 = vpack.c.b16 %v389, %v385
        %v434 = vpack.c.b16 %v390, %v386
        %v435 = vpack.c.b16 %v391, %v387
        %v436 = vpack.c.b16 %v396, %v392
        %v437 = vpack.c.b16 %v397, %v393
        %v438 = vpack.c.b16 %v398, %v394
        %v439 = vpack.c.b16 %v399, %v395
        %v440 = vpack.c.b16 %v404, %v400
        %v441 = vpack.c.b16 %v405, %v401
        %v442 = vpack.c.b16 %v406, %v402
        %v443 = vpack.c.b16 %v407, %v403
        %v444 = vpack.c.b16 %v412, %v408
        %v445 = vpack.c.b16 %v413, %v409
        %v446 = vpack.c.b16 %v414, %v410
        %v447 = vpack.c.b16 %v415, %v411
        %480 = vmatprep.subr.bf16.mxu0 %v417
        %481 = vmatpush1.bf16.msra.mxu0 %v416
        %482 = vmatprep.subr.bf16.mxu0 %v421
        %483 = vmatpush1.bf16.msra.mxu0 %v420
        %484 = vmatprep.subr.bf16.mxu0 %v425
        %485 = vmatpush1.bf16.msra.mxu0 %v424
        %486 = vmatprep.subr.bf16.mxu0 %v429
        %487 = vmatpush1.bf16.msra.mxu0 %v428
        %488 = vmatprep.subr.bf16.mxu0 %v433
        %489 = vmatpush1.bf16.msra.mxu0 %v432
        %490 = vmatprep.subr.bf16.mxu0 %v437
        %491 = vmatpush1.bf16.msra.mxu0 %v436
        %492 = vmatprep.subr.bf16.mxu0 %v441
        %493 = vmatpush1.bf16.msra.mxu0 %v440
        %494 = vmatprep.subr.bf16.mxu0 %v445
        %495 = vmatpush1.bf16.msra.mxu0 %v444
        %496 = vmatprep.subr.bf16.mxu0 0
        %497 = vmatpush1.bf16.msra.mxu0 0
        %498 = vmatprep.subr.bf16.mxu0 0
        %499 = vmatpush1.bf16.msra.mxu0 0
        %500 = vmatprep.subr.bf16.mxu0 0
        %501 = vmatpush1.bf16.msra.mxu0 0
        %502 = vmatprep.subr.bf16.mxu0 0
        %503 = vmatpush1.bf16.msra.mxu0 0
        %504 = vmatprep.subr.bf16.mxu0 0
        %505 = vmatpush1.bf16.msra.mxu0 0
        %506 = vmatprep.subr.bf16.mxu0 0
        %507 = vmatpush1.bf16.msra.mxu0 0
        %508 = vmatprep.subr.bf16.mxu0 0
        %509 = vmatpush1.bf16.msra.mxu0 0
        %510 = vmatprep.subr.bf16.mxu0 0
        %511 = vmatpush1.bf16.msra.mxu0 0
        %512 = vmatprep.mubr.bf16.mxu0 0
        %513 = vmatmul.mubr.bf16.gmra.mrb[0].mxu0 %v316
        %v514 = vpop.f32.mrb[0].mxu0
        %v515 = vadd.f32 %v291, %v514
        %v516 = vpop.f32.mrb[0].mxu0
        %v517 = vadd.f32 %v295, %v516
        %v518 = vpop.f32.mrb[0].mxu0
        %v519 = vadd.f32 %v291, %v518
        %v520 = vpop.f32.mrb[0].mxu0
        %v521 = vadd.f32 %v295, %v520
        %522 = vmatprep.mubr.bf16.mxu0 0
        %523 = vmatmul.mubr.bf16.gmra.mrb[0].mxu0 %v317
        %v524 = vpop.f32.mrb[0].mxu0
        %v525 = vadd.f32 %v291, %v524
        %v526 = vpop.f32.mrb[0].mxu0
        %v527 = vadd.f32 %v295, %v526
        %v528 = vpop.f32.mrb[0].mxu0
        %v529 = vadd.f32 %v291, %v528
        %v530 = vpop.f32.mrb[0].mxu0
        %v531 = vadd.f32 %v295, %v530
        %532 = vdwg.mxu0
        %533 = vmatprep.subr.bf16.mxu0 %v419
        %534 = vmatpush1.bf16.msra.mxu0 %v418
        %535 = vmatprep.subr.bf16.mxu0 %v423
        %536 = vmatpush1.bf16.msra.mxu0 %v422
        %537 = vmatprep.subr.bf16.mxu0 %v427
        %538 = vmatpush1.bf16.msra.mxu0 %v426
        %539 = vmatprep.subr.bf16.mxu0 %v431
        %540 = vmatpush1.bf16.msra.mxu0 %v430
        %541 = vmatprep.subr.bf16.mxu0 %v435
        %542 = vmatpush1.bf16.msra.mxu0 %v434
        %543 = vmatprep.subr.bf16.mxu0 %v439
        %544 = vmatpush1.bf16.msra.mxu0 %v438
        %545 = vmatprep.subr.bf16.mxu0 %v443
        %546 = vmatpush1.bf16.msra.mxu0 %v442
        %547 = vmatprep.subr.bf16.mxu0 %v447
        %548 = vmatpush1.bf16.msra.mxu0 %v446
        %549 = vmatprep.subr.bf16.mxu0 0
        %550 = vmatpush1.bf16.msra.mxu0 0
        %551 = vmatprep.subr.bf16.mxu0 0
        %552 = vmatpush1.bf16.msra.mxu0 0
        %553 = vmatprep.subr.bf16.mxu0 0
        %554 = vmatpush1.bf16.msra.mxu0 0
        %555 = vmatprep.subr.bf16.mxu0 0
        %556 = vmatpush1.bf16.msra.mxu0 0
        %557 = vmatprep.subr.bf16.mxu0 0
        %558 = vmatpush1.bf16.msra.mxu0 0
        %559 = vmatprep.subr.bf16.mxu0 0
        %560 = vmatpush1.bf16.msra.mxu0 0
        %561 = vmatprep.subr.bf16.mxu0 0
        %562 = vmatpush1.bf16.msra.mxu0 0
        %563 = vmatprep.subr.bf16.mxu0 0
        %564 = vmatpush1.bf16.msra.mxu0 0
        %565 = vmatprep.mubr.bf16.mxu0 0
        %566 = vmatmul.mubr.bf16.gmra.mrb[0].mxu0 %v316
        %v567 = vpop.f32.mrb[0].mxu0
        %v568 = vadd.f32 %v299, %v567
        %v569 = vpop.f32.mrb[0].mxu0
        %v570 = vadd.f32 %v303, %v569
        %v571 = vpop.f32.mrb[0].mxu0
        %v572 = vadd.f32 %v299, %v571
        %v573 = vpop.f32.mrb[0].mxu0
        %v574 = vadd.f32 %v303, %v573
        %575 = vmatprep.mubr.bf16.mxu0 0
        %576 = vmatmul.mubr.bf16.gmra.mrb[0].mxu0 %v317
        %v577 = vpop.f32.mrb[0].mxu0
        %v578 = vadd.f32 %v299, %v577
        %v579 = vpop.f32.mrb[0].mxu0
        %v580 = vadd.f32 %v303, %v579
        %v581 = vpop.f32.mrb[0].mxu0
        %v582 = vadd.f32 %v299, %v581
        %v583 = vpop.f32.mrb[0].mxu0
        %v584 = vadd.f32 %v303, %v583
        %585 = vdwg.mxu0
        %586 = vst [vmem:[%s239] sm:$0xff] %v515
        %587 = vst [vmem:[%s239 + $0x8] sm:$0xff] %v517
        %588 = vst [vmem:[%s239 + $0x10] sm:$0xff] %v568
        %589 = vst [vmem:[%s239 + $0x18] sm:$0xff] %v570
        %590 = vst [vmem:[%s239 + $0x20] sm:$0xff] %v519
        %591 = vst [vmem:[%s239 + $0x28] sm:$0xff] %v521
        %592 = vst [vmem:[%s239 + $0x30] sm:$0xff] %v572
        %593 = vst [vmem:[%s239 + $0x38] sm:$0xff] %v574
        %594 = vst [vmem:[%s239 + $0x40] sm:$0xff] %v525
        %595 = vst [vmem:[%s239 + $0x48] sm:$0xff] %v527
        %596 = vst [vmem:[%s239 + $0x50] sm:$0xff] %v578
        %597 = vst [vmem:[%s239 + $0x58] sm:$0xff] %v580
        %598 = vst [vmem:[%s239 + $0x60] sm:$0xff] %v529
        %599 = vst [vmem:[%s239 + $0x68] sm:$0xff] %v531
        %600 = vst [vmem:[%s239 + $0x70] sm:$0xff] %v582
        %601 = vst [vmem:[%s239 + $0x78] sm:$0xff] %v584
        %s602 = sand.u32 %s121, 1
        %s603 = scalar_lea.sflag [#allocation4], %s602
        %s604 = sand.u32 %s121, 1
        %s605 = smul.addr %s604, 128
        %s606 = scalar_lea.vmem [#allocation7], %s605
        // Predicated region
        $region41: #{tpu_custom_call.1} parent=31 // pred_check
          %p607 = pneg %p131
        $region42: #{tpu_custom_call.1} parent=31 // pred_check_branch
          %609 = sbr.rel (%p607) target = $region44
        $region43: #{tpu_custom_call.1} parent=31 // pred_region
          %s610 = smul.u32 4, %s25
          %s611 = smul.u32 4, %s26
          %s613 = ssub.s32 2048, 2048
          %614 = vsyncadd %s603, %s613
          %s615 = smul.addr %s610, 4
          %s616 = sadd.s32 %s611, %s615
          %s617 = smul.addr %s616, 128
          %s618 = scalar_lea.hbm %s3, %s617
          %s619 = sshll.u32 %s606, 4
          %s620 = int_to_ptr.vmem [resolvable:$true] %s619
          %625 = dma.vmem_to_hbm [thread:$0]  %s620, 2048, %s618, %s603, 512, 512, 32
        $region44: #{tpu_custom_call.1} parent=31 // pred_fallthru
          _
      $region32: #{tpu_custom_call.1} parent=5 // pred_fallthru
        _
      %p626 = scmp.le.s32.totalorder 2, %s16
      // Predicated region
      $region45: #{tpu_custom_call.1} parent=5 // pred_check
        %p627 = pneg %p626
      $region46: #{tpu_custom_call.1} parent=5 // pred_check_branch
        %629 = sbr.rel (%p627) target = $region48
      $region47: #{tpu_custom_call.1} parent=5 // pred_region
        %s630 = ssub.s32 %s16, 2
        // Predicated region
        $region49: #{tpu_custom_call.1} parent=47 // pred_check
          %p631 = pneg %p137
        $region50: #{tpu_custom_call.1} parent=47 // pred_check_branch
          %633 = sbr.rel (%p631) target = $region52
        $region51: #{tpu_custom_call.1} parent=47 // pred_region
          %s634 = sand.u32 %s122, 1
          %s635 = scalar_lea.sflag [#allocation4], %s634
          %s636 = sand.u32 %s122, 1
          %s637 = smul.addr %s636, 128
          %s638 = scalar_lea.vmem [#allocation7], %s637
          %639 = dma.done %s635, 2048
        $region52: #{tpu_custom_call.1} parent=47 // pred_fallthru
          _
      $region48: #{tpu_custom_call.1} parent=5 // pred_fallthru
        _
    $region6: #{tpu_custom_call.1} parent=1 // loop_footer
      %s20 = sadd.s32 1, %s16
    $region7: #{tpu_custom_call.1} parent=1 // loop_footer_branch
      %15 = sbr.rel target = $region3
    $region8: #{tpu_custom_call.1} parent=1 // loop_exit
      _
    %640 = vsyncpa [#allocation3], 1
    %s641 = scalar_lea.sflag [#allocation3], 1
    %642 = vsyncpa %s641, 1
    %643 = vsyncpa [#allocation6], 1
    %644 = vsyncpa [#allocation4], 1
    %s645 = scalar_lea.sflag [#allocation4], 1
    %646 = vsyncpa %s645, 1

</llo_original>
